<compile_context>
chip_gen: v6e
topology: v6e:2x2x1
jax: 0.10.0
libtpu: 0.0.40
codegen_flags: <defaults>
</compile_context>

<pallas_src>
import math

import jax
import jax.numpy as jnp
from jax.experimental import pallas as pl
from jax.experimental.pallas import tpu as pltpu


def _pos_add_kernel(x_ref, pe_ref, o_ref):
    # x_ref / o_ref: (TS, TC) tile for one batch element (batch dim squeezed).
    # pe_ref:        (TS, TC) positional tile; its block index is constant
    # across the innermost batch grid axis, so Pallas skips the re-DMA.
    o_ref[...] = (x_ref[...] + pe_ref[...]).astype(o_ref.dtype)


def make_pos_encoding(embed_dim: int, max_len: int = 5000,
                      dtype=jnp.float32) -> jnp.ndarray:
    """Build the (1, max_len, embed_dim) sin/cos table once, in the serving dtype."""
    assert embed_dim % 2 == 0, "embed_dim must be even (as in the PyTorch module)"
    position = jnp.arange(0, max_len, dtype=jnp.float32)[:, None]            # (L, 1)
    div_term = jnp.exp(
        jnp.arange(0, embed_dim, 2, dtype=jnp.float32)
        * (-math.log(10000.0) / embed_dim)
    )                                                                         # (E/2,)
    pe = jnp.zeros((max_len, embed_dim), dtype=jnp.float32)
    pe = pe.at[:, 0::2].set(jnp.sin(position * div_term))
    pe = pe.at[:, 1::2].set(jnp.cos(position * div_term))
    return pe[None, :, :].astype(dtype)                                       # (1, L, E)


def _vmem_limit_bytes() -> int:
    """Generation-aware scoped-VMEM limit: v5e/v6e -> 64 MiB, v7x -> 48 MiB."""
    try:
        cap = pltpu.get_tpu_info().vmem_capacity_bytes
    except Exception:
        cap = 64 * 1024 * 1024          # conservative: v7x physical VMEM per TC
    return min((cap * 3) // 4, 64 * 1024 * 1024)


def _pick_seq_tile(S2: int, E2: int, itemsize: int, budget: int) -> int:
    """Fixed, VMEM-budgeted seq tile (ragged last grid block is masked)."""
    # Packed sublane granularity: 8 rows f32, 16 rows bf16, 32 rows int8/fp8.
    gran = 8 * max(1, 4 // itemsize)
    # ~6 live tiles (double-buffered x, out + pe); ~4 MiB per tile amortizes
    # the ~0.35us per-grid-step cost against v7x's 3.2 TB/s HBM.
    tile_bytes = min(budget // 6, 4 * 1024 * 1024)
    ts = max(gran, tile_bytes // (E2 * itemsize))
    ts = (ts // gran) * gran
    if ts >= S2:
        return S2                       # single block spanning the full seq extent
    return ts


def positional_encoding_forward(x: jnp.ndarray, pos_encoding: jnp.ndarray,
                                *, tile_rows: int | None = None,
                                donate_x: bool = False) -> jnp.ndarray:
    """x: (B, S, E); pos_encoding: (1, max_len, E). Returns x + pe[:, :S, :]."""
    B, S, E = x.shape
    _, max_len, E_pe = pos_encoding.shape
    assert E_pe == E and S <= max_len

    # Full table, no per-call slice: row selection happens via the BlockSpec
    # index_map. A contiguous reshape is a bitcast (no extra HBM pass).
    pe_tab = pos_encoding.reshape(max_len, E)
    if pe_tab.dtype != x.dtype:
        # Avoidable per-call cast: build the table with dtype=x.dtype at setup.
        pe_tab = pe_tab.astype(x.dtype)

    # Fold seq rows into the lane dim when E is not a multiple of 128 so the
    # kernel's last dim is lane-dense (unmasked vst). Consistent reshape of
    # both operands, so the elementwise add is unchanged.
    fold = 1
    if E % 128 != 0:
        need = 128 // math.gcd(E, 128)
        if S % need == 0 and max_len % need == 0:
            fold = need
    S2, E2 = S // fold, E * fold
    L2 = max_len // fold
    x2 = x.reshape(B, S2, E2)
    pe2 = pe_tab.reshape(L2, E2)

    itemsize = jnp.dtype(x.dtype).itemsize
    vmem_limit = _vmem_limit_bytes()
    ts = tile_rows if tile_rows is not None else _pick_seq_tile(
        S2, E2, itemsize, vmem_limit // 2)
    ts = min(ts, S2)
    n_s = pl.cdiv(S2, ts)

    # If ts equals an irregular full seq extent (< 8-row granularity), pe's
    # block must also equal its full first dim -> tiny static slice of the table.
    if ts == S2 and (S2 % 8 != 0) and L2 != S2:
        pe2 = pe2[:S2]

    # Column split so a degenerate grid still feeds both v7x TensorCores.
    n_c = 2 if (n_s * B < 2 and E2 % 256 == 0) else 1
    tc = E2 // n_c

    out = pl.pallas_call(
        _pos_add_kernel,
        out_shape=jax.ShapeDtypeStruct((B, S2, E2), x.dtype),
        # s-tiles outermost, batch innermost: pe's block index (s, c) is
        # constant across consecutive inner steps -> fetched once per s/c tile.
        grid=(n_s, n_c, B),
        in_specs=[
            pl.BlockSpec((None, ts, tc), lambda s, c, b: (b, s, c)),   # x (batch squeezed)
            pl.BlockSpec((ts, tc), lambda s, c, b: (s, c)),            # pe (reused over b)
        ],
        out_specs=pl.BlockSpec((None, ts, tc), lambda s, c, b: (b, s, c)),
        input_output_aliases=({0: 0} if donate_x else {}),
        compiler_params=pltpu.CompilerParams(
            dimension_semantics=("parallel", "parallel", "parallel"),
            vmem_limit_bytes=vmem_limit,
        ),
    )(x2, pe2)
    return out.reshape(B, S, E)


if __name__ == "__main__":
    key = jax.random.PRNGKey(0)
    k0, k1 = jax.random.split(key)

    # Primary check: matches the module's forward at small shapes.
    B, S, E = 2, 8, 32
    max_len = 64  # small max_len for the synthetic test (module default is 5000)
    x = jax.random.normal(k0, (B, S, E), dtype=jnp.float32)
    pos_encoding = make_pos_encoding(E, max_len=max_len, dtype=x.dtype)
    ref = x + pos_encoding[:, :S, :]
    out = jax.block_until_ready(positional_encoding_forward(x, pos_encoding))
    assert out.shape == (B, S, E)
    assert jnp.allclose(out, ref, atol=1e-6), "mismatch vs reference"

    # Ragged-seq check: exercises the cdiv grid / masked last block path.
    Br, Sr, Er = 1, 20, 128
    xr = jax.random.normal(k1, (Br, Sr, Er), dtype=jnp.float32)
    pe_r = make_pos_encoding(Er, max_len=max_len, dtype=xr.dtype)
    ref_r = xr + pe_r[:, :Sr, :]
    out_r = jax.block_until_ready(
        positional_encoding_forward(xr, pe_r, tile_rows=8))
    assert jnp.allclose(out_r, ref_r, atol=1e-6), "mismatch vs reference (ragged)"

    print("KERNEL_OK")
</pallas_src>

<mosaic_0001>
module attributes {stable_mosaic.version = 11 : i64} {
  func.func @_pos_add_kernel(%arg0: i32, %arg1: i32, %arg2: i32, %arg3: memref<1x2x128xf32, #tpu.memory_space<vmem>>, %arg4: memref<2x128xf32, #tpu.memory_space<vmem>>, %arg5: memref<1x2x128xf32, #tpu.memory_space<vmem>>) attributes {dimension_semantics = [#tpu.dimension_semantics<parallel>, #tpu.dimension_semantics<parallel>, #tpu.dimension_semantics<parallel>], iteration_bounds = array<i64: 1, 1, 2>, scalar_prefetch = 0 : i64, scratch_operands = 0 : i64, tpu.core_type = #tpu.core_type<tc>, window_params = [{transform_indices = @transform_0, window_bounds = array<i64: 1, 2, 128>}, {transform_indices = @transform_1, window_bounds = array<i64: 2, 128>}, {transform_indices = @transform_2, window_bounds = array<i64: 1, 2, 128>}]} {
    %c0 = arith.constant 0 : index
    %c0_0 = arith.constant 0 : index
    %c0_1 = arith.constant 0 : index
    %0 = vector.load %arg3[%c0, %c0_0, %c0_1] : memref<1x2x128xf32, #tpu.memory_space<vmem>>, vector<1x2x128xf32>
    %1 = vector.shape_cast %0 : vector<1x2x128xf32> to vector<2x128xf32>
    %c0_2 = arith.constant 0 : index
    %c0_3 = arith.constant 0 : index
    %2 = vector.load %arg4[%c0_2, %c0_3] : memref<2x128xf32, #tpu.memory_space<vmem>>, vector<2x128xf32>
    %3 = arith.addf %1, %2 : vector<2x128xf32>
    %c0_4 = arith.constant 0 : index
    %c0_5 = arith.constant 0 : index
    %c0_6 = arith.constant 0 : index
    %4 = vector.load %arg5[%c0_4, %c0_5, %c0_6] : memref<1x2x128xf32, #tpu.memory_space<vmem>>, vector<1x2x128xf32>
    %5 = vector.shape_cast %4 : vector<1x2x128xf32> to vector<2x128xf32>
    %6 = vector.shape_cast %3 : vector<2x128xf32> to vector<1x2x128xf32>
    tpu.vector_store %arg5[%c0_4, %c0_5, %c0_6], %6 {strides = array<i32>} : memref<1x2x128xf32, #tpu.memory_space<vmem>>, vector<1x2x128xf32>,
    return
  }
  func.func @transform_0(%arg0: i32, %arg1: i32, %arg2: i32) -> (i32, i32, i32) {
    %c0_i32 = arith.constant 0 : i32
    return %arg2, %arg0, %arg1 : i32, i32, i32
  }
  func.func @transform_1(%arg0: i32, %arg1: i32, %arg2: i32) -> (i32, i32) {
    %c0_i32 = arith.constant 0 : i32
    return %arg0, %arg1 : i32, i32
  }
  func.func @transform_2(%arg0: i32, %arg1: i32, %arg2: i32) -> (i32, i32, i32) {
    %c0_i32 = arith.constant 0 : i32
    return %arg2, %arg0, %arg1 : i32, i32, i32
  }
}

</mosaic_0001>

<llo_original>
// kernel: tpu_custom_call.1
$region0: #{tpu_custom_call.1}
  #allocation0 [shape = 'u32[]', space=smem, size = 0x4, offset = 0x4, fixed_abs, tag = 'smem constant byte address 0x4 - core index']
  #allocation1 [shape = 'u32[144,128]{1,0:T(1,128)}', space=vmem, size = 0x12000, scoped, tag = 'internal scratch']
  %s0 = inlined_call_operand.hbm [shape: f32[2,2,128], index: 0, kind: input, shape index: {}]
  %s1 = inlined_call_operand.hbm [shape: f32[2,128], index: 1, kind: input, shape index: {}]
  %s2 = inlined_call_operand.hbm [shape: f32[2,2,128], index: 2, kind: output, shape index: {}]
  %s3 = sld [smem:[#allocation0]]
  $region49: #{tpu_custom_call.1} parent=0
    _
  %s5 = ssub.s32 1, %s3
  %s6 = scalar_select 0, %s5, %s3
  $region1: #{tpu_custom_call.1} parent=0
    #allocation2 [shape = 'u8[2048]{0}', space=vmem, size = 0x800, scoped, tag = 'input window, operand 0']
    #allocation3 [shape = 's32[2]{0}', space=sflag, size = 0x8, scoped, tag = 'scoped memory for tpu_custom_call.1']
    #allocation4 [shape = 's32[2]{0}', space=sflag, size = 0x8, scoped, tag = 'scoped memory for tpu_custom_call.1']
    #allocation5 [shape = 'u8[1024]{0}', space=vmem, size = 0x400, scoped, tag = 'input window, operand 1, single buffered']
    #allocation6 [shape = 's32[1]{0}', space=sflag, size = 0x4, scoped, tag = 'scoped memory for tpu_custom_call.1']
    #allocation7 [shape = 'u8[2048]{0}', space=vmem, size = 0x800, scoped, tag = 'output window, operand 0']
    %7 = vsyncpa [#allocation3], 0
    %s8 = scalar_lea.sflag [#allocation3], 1
    %9 = vsyncpa %s8, 0
    %10 = vsyncpa [#allocation6], 0
    %11 = vsyncpa [#allocation4], 0
    %s12 = scalar_lea.sflag [#allocation4], 1
    %13 = vsyncpa %s12, 0
    loop: start=0, step=1, limit=4
    $region2: #{tpu_custom_call.1} parent=1 // loop_pre_header
      _
    $region3: #{tpu_custom_call.1} parent=1 // loop_header
      %s15 = sphi 0, %s19
      %p16 = scmp.ge.s32.totalorder %s15, 4
      %s22 = sphi 0, %s41
      %s23 = sphi 0, %s37
      %s24 = sphi 0, %s33
      %s25 = sphi 0, %s22
      %s26 = sphi 0, %s23
      %s27 = sphi 0, %s24
      %s28 = sphi 0, %s25
      %s29 = sphi 0, %s26
      %s30 = sphi 0, %s27
      %s48 = sphi 0, %s50
      %s51 = sphi 0, %s48
      %s52 = sphi 0, %s51
      %s68 = sphi 0, %s52
      %s76 = sphi 0, %s78
      %s79 = sphi 0, %s76
      %s80 = sphi 0, %s79
      %s96 = sphi 0, %s80
      %s106 = sphi 0, %s108
      %s109 = sphi 0, %s106
      %s110 = sphi 0, %s109
      %s126 = sphi 0, %s110
    $region4: #{tpu_custom_call.1} parent=1 // loop_header_branch
      %18 = sbr.rel (%p16) target = $region8
    $region5: #{tpu_custom_call.1} parent=1 // loop_body
      %s20 = ssub.s32 %s15, 1
      %s21 = ssub.s32 %s15, 2
      %s31 = sadd.s32 1, %s24
      %p32 = scmp.ge.s32.totalorder %s31, 2
      %s33 = scalar_select %p32, 0, %s31
      %s34 = sadd.s32 1, %s23
      %s35 = scalar_select %p32, %s34, %s23
      %p36 = scmp.ge.s32.totalorder %s35, 1
      %s37 = scalar_select %p36, 0, %s35
      %s38 = sadd.s32 1, %s22
      %s39 = scalar_select %p36, %s38, %s22
      %p40 = scmp.ge.s32.totalorder %s39, 1
      %s41 = scalar_select %p40, 0, %s39
      %s42 = ssub.s32 %s24, %s33
      %s43 = ssub.s32 %s22, %s41
      %s44 = sor.u32 %s42, %s43
      %s45 = ssub.s32 %s23, %s37
      %s46 = sor.u32 %s44, %s45
      %p47 = scmp.eq.s32.totalorder %s46, 0
      %s49 = sadd.s32 %s48, 1
      %s50 = scalar_select %p47, %s48, %s49
      %p53 = pneg %p47
      %p54 = scmp.eq.s32.totalorder %s15, 1
      %p55 = por %p53, %p54
      %p56 = scmp.ne.s32.totalorder %s48, %s51
      %p57 = scmp.eq.s32.totalorder %s15, 0
      %p58 = por %p56, %p57
      %p59 = scmp.ne.s32.totalorder %s48, %s51
      %p60 = scmp.eq.s32.totalorder %s20, 1
      %p61 = por %p59, %p60
      %p62 = scmp.ne.s32.totalorder %s51, %s52
      %p63 = scmp.eq.s32.totalorder %s20, 0
      %p64 = por %p62, %p63
      %p65 = scmp.ne.s32.totalorder %s51, %s52
      %p66 = scmp.eq.s32.totalorder %s21, 1
      %p67 = por %p65, %p66
      %p69 = scmp.ne.s32.totalorder %s52, %s68
      %p70 = scmp.eq.s32.totalorder %s21, 0
      %p71 = por %p69, %p70
      %s72 = ssub.s32 %s22, %s41
      %s73 = ssub.s32 %s23, %s37
      %s74 = sor.u32 %s72, %s73
      %p75 = scmp.eq.s32.totalorder %s74, 0
      %s77 = sadd.s32 %s76, 1
      %s78 = scalar_select %p75, %s76, %s77
      %p81 = pneg %p75
      %p82 = scmp.eq.s32.totalorder %s15, 1
      %p83 = por %p81, %p82
      %p84 = scmp.ne.s32.totalorder %s76, %s79
      %p85 = scmp.eq.s32.totalorder %s15, 0
      %p86 = por %p84, %p85
      %p87 = scmp.ne.s32.totalorder %s76, %s79
      %p88 = scmp.eq.s32.totalorder %s20, 1
      %p89 = por %p87, %p88
      %p90 = scmp.ne.s32.totalorder %s79, %s80
      %p91 = scmp.eq.s32.totalorder %s20, 0
      %p92 = por %p90, %p91
      %p93 = scmp.ne.s32.totalorder %s79, %s80
      %p94 = scmp.eq.s32.totalorder %s21, 1
      %p95 = por %p93, %p94
      %p97 = scmp.ne.s32.totalorder %s80, %s96
      %p98 = scmp.eq.s32.totalorder %s21, 0
      %p99 = por %p97, %p98
      %s100 = ssub.s32 %s24, %s33
      %s101 = ssub.s32 %s22, %s41
      %s102 = sor.u32 %s100, %s101
      %s103 = ssub.s32 %s23, %s37
      %s104 = sor.u32 %s102, %s103
      %p105 = scmp.eq.s32.totalorder %s104, 0
      %s107 = sadd.s32 %s106, 1
      %s108 = scalar_select %p105, %s106, %s107
      %p111 = pneg %p105
      %p112 = scmp.eq.s32.totalorder %s15, 1
      %p113 = por %p111, %p112
      %p114 = scmp.ne.s32.totalorder %s106, %s109
      %p115 = scmp.eq.s32.totalorder %s15, 0
      %p116 = por %p114, %p115
      %p117 = scmp.ne.s32.totalorder %s106, %s109
      %p118 = scmp.eq.s32.totalorder %s20, 1
      %p119 = por %p117, %p118
      %p120 = scmp.ne.s32.totalorder %s109, %s110
      %p121 = scmp.eq.s32.totalorder %s20, 0
      %p122 = por %p120, %p121
      %p123 = scmp.ne.s32.totalorder %s109, %s110
      %p124 = scmp.eq.s32.totalorder %s21, 1
      %p125 = por %p123, %p124
      %p127 = scmp.ne.s32.totalorder %s110, %s126
      %p128 = scmp.eq.s32.totalorder %s21, 0
      %p129 = por %p127, %p128
      %p130 = scmp.le.s32.totalorder 1, %s15
      %p131 = scmp.lt.s32.totalorder %s15, 3
      %p132 = pnand %p130, %p131
      %p133 = pneg %p132
      // Predicated region
      $region9: #{tpu_custom_call.1} parent=5 // pred_check
        _
      $region10: #{tpu_custom_call.1} parent=5 // pred_check_branch
        %135 = sbr.rel (%p132) target = $region12
      $region11: #{tpu_custom_call.1} parent=5 // pred_region
        %s136 = ssub.s32 %s15, 1
        // Predicated region
        $region13: #{tpu_custom_call.1} parent=11 // pred_check
          %p137 = pneg %p92
        $region14: #{tpu_custom_call.1} parent=11 // pred_check_branch
          %139 = sbr.rel (%p137) target = $region16
        $region15: #{tpu_custom_call.1} parent=11 // pred_region
          %s141 = ssub.s32 32, 32
          %142 = vsyncadd [#allocation6], %s141
          %s143 = sadd.s32 %s26, %s25
          %s144 = smul.addr %s143, 32
          %s145 = scalar_lea.hbm %s1, %s144
          %s147 = sshll.u32 [#allocation5], 4
          %s148 = int_to_ptr.vmem [resolvable:$true] %s147
          %150 = dma.hbm_to_vmem [thread:$0]  %s145, 32, %s148, [#allocation6]
        $region16: #{tpu_custom_call.1} parent=11 // pred_fallthru
          _
      $region12: #{tpu_custom_call.1} parent=5 // pred_fallthru
        _
      %p151 = scmp.lt.s32.totalorder %s15, 2
      // Predicated region
      $region17: #{tpu_custom_call.1} parent=5 // pred_check
        %p152 = pneg %p151
      $region18: #{tpu_custom_call.1} parent=5 // pred_check_branch
        %154 = sbr.rel (%p152) target = $region20
      $region19: #{tpu_custom_call.1} parent=5 // pred_region
        // Predicated region
        $region21: #{tpu_custom_call.1} parent=19 // pred_check
          %p155 = pneg %p58
        $region22: #{tpu_custom_call.1} parent=19 // pred_check_branch
          %157 = sbr.rel (%p155) target = $region24
        $region23: #{tpu_custom_call.1} parent=19 // pred_region
          %s158 = sand.u32 %s48, 1
          %s159 = scalar_lea.sflag [#allocation3], %s158
          %s160 = sand.u32 %s48, 1
          %s161 = smul.addr %s160, 2
          %s162 = scalar_lea.vmem [#allocation2], %s161
          %s164 = ssub.s32 32, 32
          %165 = vsyncadd %s159, %s164
          %s166 = sadd.s32 %s23, %s22
          %s167 = sadd.s32 %s166, %s24
          %s168 = smul.addr %s167, 32
          %s169 = scalar_lea.hbm %s0, %s168
          %s171 = sshll.u32 %s162, 4
          %s172 = int_to_ptr.vmem [resolvable:$true] %s171
          %174 = dma.hbm_to_vmem [thread:$0]  %s169, 32, %s172, %s159
        $region24: #{tpu_custom_call.1} parent=19 // pred_fallthru
          _
      $region20: #{tpu_custom_call.1} parent=5 // pred_fallthru
        _
      %p175 = scmp.le.s32.totalorder 1, %s15
      %p176 = scmp.lt.s32.totalorder %s15, 3
      %p177 = pnand %p175, %p176
      %p178 = pneg %p177
      // Predicated region
      $region25: #{tpu_custom_call.1} parent=5 // pred_check
        _
      $region26: #{tpu_custom_call.1} parent=5 // pred_check_branch
        %180 = sbr.rel (%p177) target = $region28
      $region27: #{tpu_custom_call.1} parent=5 // pred_region
        %s181 = ssub.s32 %s15, 1
        %s182 = sand.u32 %s51, 1
        %s183 = scalar_lea.sflag [#allocation3], %s182
        %s184 = sand.u32 %s51, 1
        %s185 = smul.addr %s184, 2
        %s186 = scalar_lea.vmem [#allocation2], %s185
        // Predicated region
        $region29: #{tpu_custom_call.1} parent=27 // pred_check
          %p187 = pneg %p64
        $region30: #{tpu_custom_call.1} parent=27 // pred_check_branch
          %189 = sbr.rel (%p187) target = $region32
        $region31: #{tpu_custom_call.1} parent=27 // pred_region
          %190 = dma.done %s183, 32
        $region32: #{tpu_custom_call.1} parent=27 // pred_fallthru
          _
        // Predicated region
        $region33: #{tpu_custom_call.1} parent=27 // pred_check
          %p191 = pneg %p92
        $region34: #{tpu_custom_call.1} parent=27 // pred_check_branch
          %193 = sbr.rel (%p191) target = $region36
        $region35: #{tpu_custom_call.1} parent=27 // pred_region
          %194 = dma.done [#allocation6], 32
        $region36: #{tpu_custom_call.1} parent=27 // pred_fallthru
          _
        %s195 = sand.u32 %s51, 1
        %s196 = scalar_lea.sflag [#allocation3], %s195
        %s197 = sand.u32 %s51, 1
        %s198 = smul.addr %s197, 2
        %s199 = scalar_lea.vmem [#allocation2], %s198
        %p200 = pneg %p64
        %p201 = pneg %p61
        %p202 = pneg %p92
        %p203 = pneg %p89
        %p204 = pneg %p122
        %p205 = pneg %p119
        %s206 = sand.u32 %s109, 1
        %s207 = scalar_lea.sflag [#allocation4], %s206
        %s208 = sand.u32 %s109, 1
        %s209 = smul.addr %s208, 2
        %s210 = scalar_lea.vmem [#allocation7], %s209
        %v211 = vld [vmem:[%s186] sm:$0x3]
        %v212 = vld [vmem:[#allocation5] sm:$0x3]
        %v213 = vadd.f32 %v211, %v212
        %214 = vst [vmem:[%s210] sm:$0x3] %v213
        %s215 = sand.u32 %s109, 1
        %s216 = scalar_lea.sflag [#allocation4], %s215
        %s217 = sand.u32 %s109, 1
        %s218 = smul.addr %s217, 2
        %s219 = scalar_lea.vmem [#allocation7], %s218
        // Predicated region
        $region37: #{tpu_custom_call.1} parent=27 // pred_check
          %p220 = pneg %p119
        $region38: #{tpu_custom_call.1} parent=27 // pred_check_branch
          %222 = sbr.rel (%p220) target = $region40
        $region39: #{tpu_custom_call.1} parent=27 // pred_region
          %s224 = ssub.s32 32, 32
          %225 = vsyncadd %s216, %s224
          %s226 = sadd.s32 %s26, %s25
          %s227 = sadd.s32 %s226, %s27
          %s228 = smul.addr %s227, 32
          %s229 = scalar_lea.hbm %s2, %s228
          %s231 = sshll.u32 %s219, 4
          %s232 = int_to_ptr.vmem [resolvable:$true] %s231
          %234 = dma.vmem_to_hbm [thread:$0]  %s232, 32, %s229, %s216
        $region40: #{tpu_custom_call.1} parent=27 // pred_fallthru
          _
      $region28: #{tpu_custom_call.1} parent=5 // pred_fallthru
        _
      %p235 = scmp.le.s32.totalorder 2, %s15
      // Predicated region
      $region41: #{tpu_custom_call.1} parent=5 // pred_check
        %p236 = pneg %p235
      $region42: #{tpu_custom_call.1} parent=5 // pred_check_branch
        %238 = sbr.rel (%p236) target = $region44
      $region43: #{tpu_custom_call.1} parent=5 // pred_region
        %s239 = ssub.s32 %s15, 2
        // Predicated region
        $region45: #{tpu_custom_call.1} parent=43 // pred_check
          %p240 = pneg %p125
        $region46: #{tpu_custom_call.1} parent=43 // pred_check_branch
          %242 = sbr.rel (%p240) target = $region48
        $region47: #{tpu_custom_call.1} parent=43 // pred_region
          %s243 = sand.u32 %s110, 1
          %s244 = scalar_lea.sflag [#allocation4], %s243
          %s245 = sand.u32 %s110, 1
          %s246 = smul.addr %s245, 2
          %s247 = scalar_lea.vmem [#allocation7], %s246
          %248 = dma.done %s244, 32
        $region48: #{tpu_custom_call.1} parent=43 // pred_fallthru
          _
      $region44: #{tpu_custom_call.1} parent=5 // pred_fallthru
        _
    $region6: #{tpu_custom_call.1} parent=1 // loop_footer
      %s19 = sadd.s32 1, %s15
    $region7: #{tpu_custom_call.1} parent=1 // loop_footer_branch
      %14 = sbr.rel target = $region3
    $region8: #{tpu_custom_call.1} parent=1 // loop_exit
      _
    %249 = vsyncpa [#allocation3], 1
    %s250 = scalar_lea.sflag [#allocation3], 1
    %251 = vsyncpa %s250, 1
    %252 = vsyncpa [#allocation6], 1
    %253 = vsyncpa [#allocation4], 1
    %s254 = scalar_lea.sflag [#allocation4], 1
    %255 = vsyncpa %s254, 1

</llo_original>
